<compile_context>
chip_gen: v5e
topology: v5e:2x2
jax: 0.10.0
libtpu: 0.0.40
codegen_flags: <defaults>
</compile_context>

<pallas_src>
import functools

import jax
import jax.numpy as jnp
from jax.experimental import pallas as pl
from jax.experimental.pallas import tpu as pltpu

_EPS = 1e-5  # PyTorch BatchNorm1d default eps


# ---------------------------------------------------------------------------
# VMEM-aware tile selection
# ---------------------------------------------------------------------------
def _vmem_budget():
    """(tiling_budget_bytes, vmem_limit_bytes) sized per TPU generation."""
    try:
        cap = int(pltpu.get_tpu_info().vmem_capacity_bytes)
    except Exception:
        cap = 64 * 1024 * 1024  # conservative: v7x per-TensorCore physical VMEM
    cap = min(cap, 128 * 1024 * 1024)
    return int(cap * 0.70), int(cap * 0.85)


def _choose_tile(c_in, c_out, in_bytes, out_bytes, budget, target=2048):
    """Largest 128-multiple lane tile whose kernel footprint fits the VMEM budget."""
    fixed = 2 * 4 * (c_out * c_in + c_out)        # W' + shift, f32, double-buffered
    fixed += 2 * 4 * (c_out * c_out + c_out)      # per-b Gram + sum accumulators
    per_lane = 2 * (c_in * in_bytes + max(c_out * out_bytes, 1))  # dbl-buffered act tiles
    avail = max(budget - fixed, 0)
    tn = min(target, avail // per_lane)
    return max(128, (tn // 128) * 128)


# ---------------------------------------------------------------------------
# Kernels
# ---------------------------------------------------------------------------
def _input_stats_kernel(x_ref, sum_ref, gram_ref):
    """Per-B partial sum / Gram of the input slab (padded columns are zero -> no mask)."""
    @pl.when(pl.program_id(1) == 0)
    def _init():
        sum_ref[...] = jnp.zeros_like(sum_ref)
        gram_ref[...] = jnp.zeros_like(gram_ref)

    x = x_ref[...].astype(jnp.float32)                     # [C, TN]
    sum_ref[...] += jnp.sum(x, axis=1, keepdims=True)
    # x @ x^T: contract the lane axis of both operands (no explicit transpose tile).
    gram_ref[...] += jax.lax.dot_general(
        x, x, (((1,), (1,)), ((), ())), preferred_element_type=jnp.float32)


def _layer_kernel(h_ref, w_ref, shift_ref, o_ref, *stat_refs,
                  compute_stats, mxu_bf16, tn, n_valid, needs_mask):
    """h_out = relu(W' @ h + shift); optionally accumulate per-B sum / Gram of h_out.

    h_ref:     [C_in, TN]    activation tile (f32 input layer, bf16 intermediates)
    w_ref:     [C_out, C_in] BN-scale-folded weight (resident, f32)
    shift_ref: [C_out, 1]    BN shift (beta - mean*scale, f32)
    o_ref:     [C_out, TN]   bf16 for intermediates, f32 for the final layer
    """
    h = h_ref[...]
    w = w_ref[...]
    if mxu_bf16:  # wide layers: feed the MXU in bf16 with f32 accumulation
        h = h.astype(jnp.bfloat16)
        w = w.astype(jnp.bfloat16)
    z = jnp.dot(w, h, preferred_element_type=jnp.float32)
    h_out = jnp.maximum(z + shift_ref[...], 0.0)
    o_ref[...] = h_out.astype(o_ref.dtype)

    if compute_stats:
        sum_ref, gram_ref = stat_refs

        @pl.when(pl.program_id(1) == 0)
        def _init():
            sum_ref[...] = jnp.zeros_like(sum_ref)
            gram_ref[...] = jnp.zeros_like(gram_ref)

        # Stats of exactly what the next layer will consume (post bf16 round-trip),
        # accumulated in f32; padded columns masked out of the batch statistics.
        h_stat = h_out.astype(o_ref.dtype).astype(jnp.float32)
        if needs_mask:
            col = (pl.program_id(1) * tn
                   + jax.lax.broadcasted_iota(jnp.int32, (1, tn), 1))
            h_stat = jnp.where(col < n_valid, h_stat, 0.0)
        sum_ref[...] += jnp.sum(h_stat, axis=1, keepdims=True)
        hg = h_stat.astype(jnp.bfloat16) if mxu_bf16 else h_stat
        gram_ref[...] += jax.lax.dot_general(
            hg, hg, (((1,), (1,)), ((), ())), preferred_element_type=jnp.float32)


# ---------------------------------------------------------------------------
# pallas_call wrappers
# ---------------------------------------------------------------------------
def _input_stats(x, tn, vmem_limit):
    B, C, Np = x.shape
    psum, pgram = pl.pallas_call(
        _input_stats_kernel,
        out_shape=(jax.ShapeDtypeStruct((B, C, 1), jnp.float32),
                   jax.ShapeDtypeStruct((B, C, C), jnp.float32)),
        grid=(B, Np // tn),
        in_specs=[pl.BlockSpec((None, C, tn), lambda b, n: (b, 0, n))],
        out_specs=(pl.BlockSpec((None, C, 1), lambda b, n: (b, 0, 0)),
                   pl.BlockSpec((None, C, C), lambda b, n: (b, 0, 0))),
        compiler_params=pltpu.CompilerParams(
            dimension_semantics=("parallel", "arbitrary"),
            vmem_limit_bytes=vmem_limit),
    )(x)
    return psum.sum(axis=0), pgram.sum(axis=0)


def _fused_layer(h, w_folded, shift, tn, n_valid, compute_stats, act_dtype, vmem_limit):
    B, C_in, Np = h.shape
    C_out = w_folded.shape[0]
    mxu_bf16 = min(C_in, C_out) >= 256
    needs_mask = Np != n_valid
    out_dtype = act_dtype if compute_stats else jnp.float32

    kernel = functools.partial(_layer_kernel, compute_stats=compute_stats,
                               mxu_bf16=mxu_bf16, tn=tn, n_valid=n_valid,
                               needs_mask=needs_mask)
    in_specs = [
        pl.BlockSpec((None, C_in, tn), lambda b, n: (b, 0, n)),
        pl.BlockSpec((C_out, C_in), lambda b, n: (0, 0)),   # resident weight
        pl.BlockSpec((C_out, 1), lambda b, n: (0, 0)),      # resident shift
    ]
    out_h_spec = pl.BlockSpec((None, C_out, tn), lambda b, n: (b, 0, n))

    if compute_stats:
        out_shape = (jax.ShapeDtypeStruct((B, C_out, Np), out_dtype),
                     jax.ShapeDtypeStruct((B, C_out, 1), jnp.float32),
                     jax.ShapeDtypeStruct((B, C_out, C_out), jnp.float32))
        out_specs = (out_h_spec,
                     pl.BlockSpec((None, C_out, 1), lambda b, n: (b, 0, 0)),
                     pl.BlockSpec((None, C_out, C_out), lambda b, n: (b, 0, 0)))
        semantics = ("parallel", "arbitrary")   # per-B partial accumulators -> B parallel
    else:
        out_shape = jax.ShapeDtypeStruct((B, C_out, Np), out_dtype)
        out_specs = out_h_spec
        semantics = ("parallel", "parallel")    # last layer: fully megacore-splittable

    res = pl.pallas_call(
        kernel,
        out_shape=out_shape,
        grid=(B, Np // tn),
        in_specs=in_specs,
        out_specs=out_specs,
        compiler_params=pltpu.CompilerParams(
            dimension_semantics=semantics, vmem_limit_bytes=vmem_limit),
    )(h, w_folded, shift)

    if compute_stats:
        h_out, psum, pgram = res
        return h_out, psum.sum(axis=0), pgram.sum(axis=0)
    return res


# ---------------------------------------------------------------------------
# Parameter init (mirrors the PyTorch module's __init__) and forward
# ---------------------------------------------------------------------------
def init_params(key, nch_input, nch_layers):
    """Conv1d weight (xavier_normal, gain=1), Conv1d bias (unused: cancelled by
    training-mode BN mean subtraction), BN gamma=1, beta=0."""
    params = []
    last = nch_input
    for outp in nch_layers:
        key, k_w, k_b = jax.random.split(key, 3)
        std = (2.0 / (last + outp)) ** 0.5
        w = std * jax.random.normal(k_w, (outp, last), jnp.float32)
        bound = 1.0 / (last ** 0.5)
        b = jax.random.uniform(k_b, (outp,), jnp.float32, -bound, bound)  # unused
        gamma = jnp.ones((outp,), jnp.float32)
        beta = jnp.zeros((outp,), jnp.float32)
        params.append((w, b, gamma, beta))
        last = outp
    return params


def _fold_bn(w, gamma, beta, colsum, gram, m_total):
    """Fold training-mode BN (batch stats of z = W @ h) into (W', shift) from the
    per-channel sum / Gram of h.  Tiny [C,C] math in plain JAX, f32 throughout.
    NOTE: uncentered E[hh^T] - mu mu^T form; validated against the reference below."""
    mu = colsum[:, 0] / m_total                       # E[h]
    cov = gram / m_total - jnp.outer(mu, mu)          # Cov[h]
    mean_z = w @ mu                                   # E[z] (Conv bias cancels)
    var_z = jnp.sum((w @ cov) * w, axis=1)            # diag(W Cov W^T), biased variance
    scale = gamma * jax.lax.rsqrt(var_z + _EPS)
    shift = beta - mean_z * scale
    return w * scale[:, None], shift[:, None]


def mlpnet_relu_forward(x, params, act_dtype=jnp.bfloat16, lane_target=2048):
    """MLPNet_relu forward (b_shared=True, if_bn=True, training-mode BN stats):
    [B, Cin, N] -> [B, Cout, N]."""
    B, C0, N = x.shape
    budget, vmem_limit = _vmem_budget()
    f32b = 4
    actb = jnp.dtype(act_dtype).itemsize
    n_layers = len(params)

    # Uniform lane tile sized for the worst (widest) layer so every sweep shares one Np.
    tn = _choose_tile(C0, C0, f32b, 0, budget, lane_target)          # input-stats sweep
    last, in_b = C0, f32b
    for i, (w, *_rest) in enumerate(params):
        c_out = w.shape[0]
        out_b = actb if i + 1 < n_layers else f32b
        tn = min(tn, _choose_tile(last, c_out, in_b, out_b, budget, lane_target))
        last, in_b = c_out, actb
    tn = min(tn, ((N + 127) // 128) * 128)            # don't over-pad small N
    Np = ((N + tn - 1) // tn) * tn

    xp = x.astype(jnp.float32)
    if Np != N:
        xp = jnp.pad(xp, ((0, 0), (0, 0), (0, Np - N)))  # zero-pad: stats unaffected

    m_total = B * N
    colsum, gram = _input_stats(xp, tn, vmem_limit)
    h = xp
    for i, (w, _b, gamma, beta) in enumerate(params):
        w_folded, shift = _fold_bn(w, gamma, beta, colsum, gram, m_total)
        if i + 1 < n_layers:
            h, colsum, gram = _fused_layer(h, w_folded, shift, tn, N, True,
                                           act_dtype, vmem_limit)
        else:
            h = _fused_layer(h, w_folded, shift, tn, N, False, act_dtype, vmem_limit)
    return h[:, :, :N] if Np != N else h


def _reference(x, params):
    """Plain-JAX f32 reference with explicit PyTorch semantics (conv1x1 + BN(train) + ReLU)."""
    h = x
    for (w, b, gamma, beta) in params:
        z = jnp.einsum('oc,bcn->bon', w, h) + b[None, :, None]
        mean = jnp.mean(z, axis=(0, 2), keepdims=True)
        var = jnp.mean((z - mean) ** 2, axis=(0, 2), keepdims=True)
        zn = (z - mean) * jax.lax.rsqrt(var + _EPS)
        h = jnp.maximum(zn * gamma[None, :, None] + beta[None, :, None], 0.0)
    return h


if __name__ == "__main__":
    key = jax.random.PRNGKey(0)
    k_x, k_p = jax.random.split(key)

    B, Cin, N = 2, 4, 16
    nch_layers = [32, 32, 16]

    x = jax.random.normal(k_x, (B, Cin, N), jnp.float32)
    params = init_params(k_p, Cin, nch_layers)

    out = jax.block_until_ready(mlpnet_relu_forward(x, params))

    assert out.shape == (B, nch_layers[-1], N), out.shape
    assert bool(jnp.all(out >= 0.0)), "ReLU output must be non-negative"

    ref = _reference(x, params)
    max_err = float(jnp.max(jnp.abs(out - ref)))
    # bf16 activation hand-off between layers -> tolerance looser than pure-f32.
    assert max_err < 5e-2, f"mismatch vs reference: {max_err}"

    print("KERNEL_OK")
</pallas_src>

<mosaic_0001>
module attributes {stable_mosaic.version = 11 : i64} {
  func.func @_input_stats_kernel(%arg0: i32, %arg1: i32, %arg2: memref<1x4x128xf32, #tpu.memory_space<vmem>>, %arg3: memref<1x4x1xf32, #tpu.memory_space<vmem>>, %arg4: memref<1x4x4xf32, #tpu.memory_space<vmem>>) attributes {dimension_semantics = [#tpu.dimension_semantics<parallel>, #tpu.dimension_semantics<arbitrary>], iteration_bounds = array<i64: 2, 1>, scalar_prefetch = 0 : i64, scratch_operands = 0 : i64, tpu.core_type = #tpu.core_type<tc>, window_params = [{transform_indices = @transform_0, window_bounds = array<i64: 1, 4, 128>}, {transform_indices = @transform_1, window_bounds = array<i64: 1, 4, 1>}, {transform_indices = @transform_2, window_bounds = array<i64: 1, 4, 4>}]} {
    %c0_i32 = arith.constant 0 : i32
    %0 = arith.cmpi eq, %arg1, %c0_i32 : i32
    %1 = arith.extui %0 : i1 to i32
    %c0_i32_0 = arith.constant 0 : i32
    %2 = arith.cmpi ne, %1, %c0_i32_0 : i32
    scf.if %2 {
      %cst_16 = arith.constant 0.000000e+00 : f32
      %20 = vector.broadcast %cst_16 : f32 to vector<4x1xf32>
      %c0_17 = arith.constant 0 : index
      %c0_18 = arith.constant 0 : index
      %c0_19 = arith.constant 0 : index
      %21 = vector.load %arg3[%c0_17, %c0_18, %c0_19] : memref<1x4x1xf32, #tpu.memory_space<vmem>>, vector<1x4x1xf32>
      %22 = vector.shape_cast %21 : vector<1x4x1xf32> to vector<4x1xf32>
      %23 = vector.shape_cast %20 : vector<4x1xf32> to vector<1x4x1xf32>
      tpu.vector_store %arg3[%c0_17, %c0_18, %c0_19], %23 {strides = array<i32>} : memref<1x4x1xf32, #tpu.memory_space<vmem>>, vector<1x4x1xf32>,
      %cst_20 = arith.constant 0.000000e+00 : f32
      %24 = vector.broadcast %cst_20 : f32 to vector<4x4xf32>
      %c0_21 = arith.constant 0 : index
      %c0_22 = arith.constant 0 : index
      %c0_23 = arith.constant 0 : index
      %25 = vector.load %arg4[%c0_21, %c0_22, %c0_23] : memref<1x4x4xf32, #tpu.memory_space<vmem>>, vector<1x4x4xf32>
      %26 = vector.shape_cast %25 : vector<1x4x4xf32> to vector<4x4xf32>
      %27 = vector.shape_cast %24 : vector<4x4xf32> to vector<1x4x4xf32>
      tpu.vector_store %arg4[%c0_21, %c0_22, %c0_23], %27 {strides = array<i32>} : memref<1x4x4xf32, #tpu.memory_space<vmem>>, vector<1x4x4xf32>,
    } else {
    }
    %c0 = arith.constant 0 : index
    %c0_1 = arith.constant 0 : index
    %c0_2 = arith.constant 0 : index
    %3 = vector.load %arg2[%c0, %c0_1, %c0_2] : memref<1x4x128xf32, #tpu.memory_space<vmem>>, vector<1x4x128xf32>
    %4 = vector.shape_cast %3 : vector<1x4x128xf32> to vector<4x128xf32>
    %c0_3 = arith.constant 0 : index
    %c0_4 = arith.constant 0 : index
    %c0_5 = arith.constant 0 : index
    %5 = vector.load %arg3[%c0_3, %c0_4, %c0_5] : memref<1x4x1xf32, #tpu.memory_space<vmem>>, vector<1x4x1xf32>
    %6 = vector.shape_cast %5 : vector<1x4x1xf32> to vector<4x1xf32>
    %cst = arith.constant dense<0.000000e+00> : vector<4xf32>
    %7 = vector.multi_reduction <add>, %4, %cst [1] : vector<4x128xf32> to vector<4xf32>
    %8 = vector.shape_cast %7 : vector<4xf32> to vector<4x1xf32>
    %9 = arith.addf %6, %8 : vector<4x1xf32>
    %c0_6 = arith.constant 0 : index
    %c0_7 = arith.constant 0 : index
    %c0_8 = arith.constant 0 : index
    %10 = vector.load %arg3[%c0_6, %c0_7, %c0_8] : memref<1x4x1xf32, #tpu.memory_space<vmem>>, vector<1x4x1xf32>
    %11 = vector.shape_cast %10 : vector<1x4x1xf32> to vector<4x1xf32>
    %12 = vector.shape_cast %9 : vector<4x1xf32> to vector<1x4x1xf32>
    tpu.vector_store %arg3[%c0_6, %c0_7, %c0_8], %12 {strides = array<i32>} : memref<1x4x1xf32, #tpu.memory_space<vmem>>, vector<1x4x1xf32>,
    %c0_9 = arith.constant 0 : index
    %c0_10 = arith.constant 0 : index
    %c0_11 = arith.constant 0 : index
    %13 = vector.load %arg4[%c0_9, %c0_10, %c0_11] : memref<1x4x4xf32, #tpu.memory_space<vmem>>, vector<1x4x4xf32>
    %14 = vector.shape_cast %13 : vector<1x4x4xf32> to vector<4x4xf32>
    %cst_12 = arith.constant dense<0.000000e+00> : vector<4x4xf32>
    %15 = tpu.matmul %4, %4, %cst_12 {dimension_numbers = #tpu.dot_dimension_numbers<[1], [1], [0], [0], [0, 0, 1, 0], [], []>} : vector<4x128xf32>, vector<4x128xf32>, vector<4x4xf32> -> vector<4x4xf32>
    %16 = arith.addf %14, %15 : vector<4x4xf32>
    %c0_13 = arith.constant 0 : index
    %c0_14 = arith.constant 0 : index
    %c0_15 = arith.constant 0 : index
    %17 = vector.load %arg4[%c0_13, %c0_14, %c0_15] : memref<1x4x4xf32, #tpu.memory_space<vmem>>, vector<1x4x4xf32>
    %18 = vector.shape_cast %17 : vector<1x4x4xf32> to vector<4x4xf32>
    %19 = vector.shape_cast %16 : vector<4x4xf32> to vector<1x4x4xf32>
    tpu.vector_store %arg4[%c0_13, %c0_14, %c0_15], %19 {strides = array<i32>} : memref<1x4x4xf32, #tpu.memory_space<vmem>>, vector<1x4x4xf32>,
    return
  }
  func.func @transform_0(%arg0: i32, %arg1: i32) -> (i32, i32, i32) {
    %c0_i32 = arith.constant 0 : i32
    %c0_i32_0 = arith.constant 0 : i32
    return %arg0, %c0_i32, %arg1 : i32, i32, i32
  }
  func.func @transform_1(%arg0: i32, %arg1: i32) -> (i32, i32, i32) {
    %c0_i32 = arith.constant 0 : i32
    %c0_i32_0 = arith.constant 0 : i32
    %c0_i32_1 = arith.constant 0 : i32
    return %arg0, %c0_i32, %c0_i32_0 : i32, i32, i32
  }
  func.func @transform_2(%arg0: i32, %arg1: i32) -> (i32, i32, i32) {
    %c0_i32 = arith.constant 0 : i32
    %c0_i32_0 = arith.constant 0 : i32
    %c0_i32_1 = arith.constant 0 : i32
    return %arg0, %c0_i32, %c0_i32_0 : i32, i32, i32
  }
}

</mosaic_0001>

<llo_original>
// kernel: tpu_custom_call.1
$region0: #{tpu_custom_call.1}
  #allocation0 [shape = 'u32[]', space=smem, size = 0x4, offset = 0x4, fixed_abs, tag = 'smem constant byte address 0x4 - core index']
  #allocation1 [shape = 'u32[72,128]{1,0:T(1,128)}', space=vmem, size = 0x9000, scoped, tag = 'internal scratch']
  %s0 = inlined_call_operand.hbm [shape: f32[2,4,128], index: 0, kind: input, shape index: {}]
  %s1 = inlined_call_operand.vmem [shape: f32[2,4,1], index: 1, kind: output, shape index: {0}]
  %s2 = inlined_call_operand.hbm [shape: f32[2,4,4], index: 2, kind: output, shape index: {1}]
  %3 = xla_tuple %s1, %s2
  %s4 = sld [smem:[#allocation0]]
  $region53: #{tpu_custom_call.1} parent=0
    _
  %s6 = ssub.s32 1, %s4
  %s7 = scalar_select 0, %s6, %s4
  $region1: #{tpu_custom_call.1} parent=0
    #allocation2 [shape = 'u8[4096]{0}', space=vmem, size = 0x1000, scoped, tag = 'input window, operand 0']
    #allocation3 [shape = 's32[2]{0}', space=sflag, size = 0x8, scoped, tag = 'scoped memory for tpu_custom_call.1']
    #allocation4 [shape = 's32[2]{0}', space=sflag, size = 0x8, scoped, tag = 'scoped memory for tpu_custom_call.1']
    #allocation5 [shape = 'u8[4096]{0}', space=vmem, size = 0x1000, scoped, tag = 'output window, operand 1']
    %8 = vsyncpa [#allocation3], 0
    %s9 = scalar_lea.sflag [#allocation3], 1
    %10 = vsyncpa %s9, 0
    %11 = vsyncpa [#allocation4], 0
    %s12 = scalar_lea.sflag [#allocation4], 1
    %13 = vsyncpa %s12, 0
    loop: start=0, step=1, limit=4
    $region2: #{tpu_custom_call.1} parent=1 // loop_pre_header
      _
    $region3: #{tpu_custom_call.1} parent=1 // loop_header
      %s15 = sphi 0, %s19
      %p16 = scmp.ge.s32.totalorder %s15, 4
      %s22 = sphi 0, %s34
      %s23 = sphi 0, %s30
      %s24 = sphi 0, %s22
      %s25 = sphi 0, %s23
      %s26 = sphi 0, %s24
      %s27 = sphi 0, %s25
      %s39 = sphi 0, %s41
      %s42 = sphi 0, %s39
      %s43 = sphi 0, %s42
      %s59 = sphi 0, %s43
      %s65 = sphi 0, %s67
      %s68 = sphi 0, %s65
      %s69 = sphi 0, %s68
      %s85 = sphi 0, %s69
      %s91 = sphi 0, %s93
      %s94 = sphi 0, %s91
      %s95 = sphi 0, %s94
      %s111 = sphi 0, %s95
    $region4: #{tpu_custom_call.1} parent=1 // loop_header_branch
      %18 = sbr.rel (%p16) target = $region8
    $region5: #{tpu_custom_call.1} parent=1 // loop_body
      %s20 = ssub.s32 %s15, 1
      %s21 = ssub.s32 %s15, 2
      %s28 = sadd.s32 1, %s23
      %p29 = scmp.ge.s32.totalorder %s28, 1
      %s30 = scalar_select %p29, 0, %s28
      %s31 = sadd.s32 1, %s22
      %s32 = scalar_select %p29, %s31, %s22
      %p33 = scmp.ge.s32.totalorder %s32, 2
      %s34 = scalar_select %p33, 0, %s32
      %s35 = ssub.s32 %s22, %s34
      %s36 = ssub.s32 %s23, %s30
      %s37 = sor.u32 %s35, %s36
      %p38 = scmp.eq.s32.totalorder %s37, 0
      %s40 = sadd.s32 %s39, 1
      %s41 = scalar_select %p38, %s39, %s40
      %p44 = pneg %p38
      %p45 = scmp.eq.s32.totalorder %s15, 1
      %p46 = por %p44, %p45
      %p47 = scmp.ne.s32.totalorder %s39, %s42
      %p48 = scmp.eq.s32.totalorder %s15, 0
      %p49 = por %p47, %p48
      %p50 = scmp.ne.s32.totalorder %s39, %s42
      %p51 = scmp.eq.s32.totalorder %s20, 1
      %p52 = por %p50, %p51
      %p53 = scmp.ne.s32.totalorder %s42, %s43
      %p54 = scmp.eq.s32.totalorder %s20, 0
      %p55 = por %p53, %p54
      %p56 = scmp.ne.s32.totalorder %s42, %s43
      %p57 = scmp.eq.s32.totalorder %s21, 1
      %p58 = por %p56, %p57
      %p60 = scmp.ne.s32.totalorder %s43, %s59
      %p61 = scmp.eq.s32.totalorder %s21, 0
      %p62 = por %p60, %p61
      %s63 = ssub.s32 %s22, %s34
      %p64 = scmp.eq.s32.totalorder %s63, 0
      %s66 = sadd.s32 %s65, 1
      %s67 = scalar_select %p64, %s65, %s66
      %p70 = pneg %p64
      %p71 = scmp.eq.s32.totalorder %s15, 1
      %p72 = por %p70, %p71
      %p73 = scmp.ne.s32.totalorder %s65, %s68
      %p74 = scmp.eq.s32.totalorder %s15, 0
      %p75 = por %p73, %p74
      %p76 = scmp.ne.s32.totalorder %s65, %s68
      %p77 = scmp.eq.s32.totalorder %s20, 1
      %p78 = por %p76, %p77
      %p79 = scmp.ne.s32.totalorder %s68, %s69
      %p80 = scmp.eq.s32.totalorder %s20, 0
      %p81 = por %p79, %p80
      %p82 = scmp.ne.s32.totalorder %s68, %s69
      %p83 = scmp.eq.s32.totalorder %s21, 1
      %p84 = por %p82, %p83
      %p86 = scmp.ne.s32.totalorder %s69, %s85
      %p87 = scmp.eq.s32.totalorder %s21, 0
      %p88 = por %p86, %p87
      %s89 = ssub.s32 %s22, %s34
      %p90 = scmp.eq.s32.totalorder %s89, 0
      %s92 = sadd.s32 %s91, 1
      %s93 = scalar_select %p90, %s91, %s92
      %p96 = pneg %p90
      %p97 = scmp.eq.s32.totalorder %s15, 1
      %p98 = por %p96, %p97
      %p99 = scmp.ne.s32.totalorder %s91, %s94
      %p100 = scmp.eq.s32.totalorder %s15, 0
      %p101 = por %p99, %p100
      %p102 = scmp.ne.s32.totalorder %s91, %s94
      %p103 = scmp.eq.s32.totalorder %s20, 1
      %p104 = por %p102, %p103
      %p105 = scmp.ne.s32.totalorder %s94, %s95
      %p106 = scmp.eq.s32.totalorder %s20, 0
      %p107 = por %p105, %p106
      %p108 = scmp.ne.s32.totalorder %s94, %s95
      %p109 = scmp.eq.s32.totalorder %s21, 1
      %p110 = por %p108, %p109
      %p112 = scmp.ne.s32.totalorder %s95, %s111
      %p113 = scmp.eq.s32.totalorder %s21, 0
      %p114 = por %p112, %p113
      %p115 = scmp.le.s32.totalorder 1, %s15
      %p116 = scmp.lt.s32.totalorder %s15, 3
      %p117 = pnand %p115, %p116
      %p118 = pneg %p117
      // Predicated region
      $region9: #{tpu_custom_call.1} parent=5 // pred_check
        _
      $region10: #{tpu_custom_call.1} parent=5 // pred_check_branch
        %120 = sbr.rel (%p117) target = $region12
      $region11: #{tpu_custom_call.1} parent=5 // pred_region
        %s121 = ssub.s32 %s15, 1
      $region12: #{tpu_custom_call.1} parent=5 // pred_fallthru
        _
      %p122 = scmp.lt.s32.totalorder %s15, 2
      // Predicated region
      $region13: #{tpu_custom_call.1} parent=5 // pred_check
        %p123 = pneg %p122
      $region14: #{tpu_custom_call.1} parent=5 // pred_check_branch
        %125 = sbr.rel (%p123) target = $region16
      $region15: #{tpu_custom_call.1} parent=5 // pred_region
        // Predicated region
        $region17: #{tpu_custom_call.1} parent=15 // pred_check
          %p126 = pneg %p49
        $region18: #{tpu_custom_call.1} parent=15 // pred_check_branch
          %128 = sbr.rel (%p126) target = $region20
        $region19: #{tpu_custom_call.1} parent=15 // pred_region
          %s129 = sand.u32 %s39, 1
          %s130 = scalar_lea.sflag [#allocation3], %s129
          %s131 = sand.u32 %s39, 1
          %s132 = smul.addr %s131, 4
          %s133 = scalar_lea.vmem [#allocation2], %s132
          %135 = vsyncadd %s130, 0
          %s136 = sadd.s32 %s23, %s22
          %s137 = smul.addr %s136, 4
          %s138 = scalar_lea.hbm %s0, %s137
          %s140 = sshll.u32 %s138, 4
          %s141 = int_to_ptr.hbm [resolvable:$true] %s140
          %s142 = sshll.u32 %s133, 4
          %s143 = int_to_ptr.vmem [resolvable:$true] %s142
          %145 = dma.hbm_to_vmem [thread:$0]  %s141, 64, %s143, %s130
        $region20: #{tpu_custom_call.1} parent=15 // pred_fallthru
          _
      $region16: #{tpu_custom_call.1} parent=5 // pred_fallthru
        _
      %p146 = scmp.le.s32.totalorder 1, %s15
      %p147 = scmp.lt.s32.totalorder %s15, 3
      %p148 = pnand %p146, %p147
      %p149 = pneg %p148
      // Predicated region
      $region21: #{tpu_custom_call.1} parent=5 // pred_check
        _
      $region22: #{tpu_custom_call.1} parent=5 // pred_check_branch
        %151 = sbr.rel (%p148) target = $region24
      $region23: #{tpu_custom_call.1} parent=5 // pred_region
        %s152 = ssub.s32 %s15, 1
        %s153 = sand.u32 %s42, 1
        %s154 = scalar_lea.sflag [#allocation3], %s153
        %s155 = sand.u32 %s42, 1
        %s156 = smul.addr %s155, 4
        %s157 = scalar_lea.vmem [#allocation2], %s156
        // Predicated region
        $region25: #{tpu_custom_call.1} parent=23 // pred_check
          %p158 = pneg %p55
        $region26: #{tpu_custom_call.1} parent=23 // pred_check_branch
          %160 = sbr.rel (%p158) target = $region28
        $region27: #{tpu_custom_call.1} parent=23 // pred_region
          %162 = dma.done %s154, 64
        $region28: #{tpu_custom_call.1} parent=23 // pred_fallthru
          _
        %s163 = sand.u32 %s42, 1
        %s164 = scalar_lea.sflag [#allocation3], %s163
        %s165 = sand.u32 %s42, 1
        %s166 = smul.addr %s165, 4
        %s167 = scalar_lea.vmem [#allocation2], %s166
        %p168 = pneg %p55
        %p169 = pneg %p52
        %p170 = pneg %p81
        %p171 = pneg %p78
        %p172 = scmp.lt.s32.totalorder %s24, 1
        %s173 = scalar_select %p172, %s24, 1
        %s174 = smul.addr %s173, 4
        %s175 = scalar_lea.vmem %s1, %s174
        %p176 = pneg %p107
        %p177 = pneg %p104
        %s178 = sand.u32 %s94, 1
        %s179 = scalar_lea.sflag [#allocation4], %s178
        %s180 = sand.u32 %s94, 1
        %s181 = smul.addr %s180, 4
        %s182 = scalar_lea.vmem [#allocation5], %s181
        %p183 = scmp.lt.s32.totalorder %s24, 1
        %s184 = scalar_select %p183, %s24, 1
        %s185 = smul.addr %s184, 4
        %s186 = scalar_lea.vmem %s1, %s185
        %p187 = scmp.eq.s32.totalorder %s25, 0
        // Predicated region
        $region29: #{tpu_custom_call.1} parent=23 // pred_check
          %p188 = pneg %p187
        $region30: #{tpu_custom_call.1} parent=23 // pred_check_branch
          %190 = sbr.rel (%p188) target = $region32
        $region31: #{tpu_custom_call.1} parent=23 // pred_region
          %vm191 = vcmask 3072
          %192 = vst.msk [vmem:[%s186] sm:$0xf] %vm191, 0.0
          %vm193 = vcmask 27648
          %194 = vst.msk [vmem:[%s182] sm:$0xf] %vm193, 0.0
        $region32: #{tpu_custom_call.1} parent=23 // pred_fallthru
          _
        %v195 = vld [vmem:[%s157] sm:$0xf]
        %v196 = vld [vmem:[%s186] sm:$0xf]
        %vm197 = vcmask 1043456
        %v198 = vsel %vm197, %v195, 0.0
        %199 = vadd.xlane.f32.xlu0 %v198
        %v200 = vpop.xlane.xlu0 %199
        %v201 = vadd.f32 %v196, %v200
        %vm202 = vcmask 3072
        %203 = vst.msk [vmem:[%s186] sm:$0xf] %vm202, %v201
        %v204 = vld [vmem:[%s182] sm:$0xf]
        %205 = vmatpush.xpose.msra.mxu0 0.0
        %206 = vmatpush.xpose.msra.mxu0 0.0
        %207 = vmatpush.xpose.msra.mxu0 0.0
        %208 = vmatpush.xpose.msra.mxu0 0.0
        %209 = vmatpush.xpose.msra.mxu0 0.0
        %210 = vmatpush.xpose.msra.mxu0 0.0
        %211 = vmatpush.xpose.msra.mxu0 0.0
        %212 = vmatpush.xpose.msra.mxu0 0.0
        %213 = vmatpush.xpose.msra.mxu0 0.0
        %214 = vmatpush.xpose.msra.mxu0 0.0
        %215 = vmatpush.xpose.msra.mxu0 0.0
        %216 = vmatpush.xpose.msra.mxu0 0.0
        %217 = vmatpush.xpose.msra.mxu0 0.0
        %218 = vmatpush.xpose.msra.mxu0 0.0
        %219 = vmatpush.xpose.msra.mxu0 0.0
        %220 = vmatpush.xpose.msra.mxu0 %v195
        %221 = vmatmul.f32.gmra.mxu0 %v195
        %v222 = vpop.f32.mrf.mxu0
        %v223 = vadd.f32 0.0, %v222
        %224 = vdwg.mxu0
        %v225 = vadd.f32 %v204, %v223
        %vm226 = vcmask 27648
        %227 = vst.msk [vmem:[%s182] sm:$0xf] %vm226, %v225
        %p228 = scmp.lt.s32.totalorder %s24, 1
        %s229 = scalar_select %p228, %s24, 1
        %s230 = smul.addr %s229, 4
        %s231 = scalar_lea.vmem %s1, %s230
        %s232 = sand.u32 %s94, 1
        %s233 = scalar_lea.sflag [#allocation4], %s232
        %s234 = sand.u32 %s94, 1
        %s235 = smul.addr %s234, 4
        %s236 = scalar_lea.vmem [#allocation5], %s235
        // Predicated region
        $region33: #{tpu_custom_call.1} parent=23 // pred_check
          %p237 = pneg %p78
        $region34: #{tpu_custom_call.1} parent=23 // pred_check_branch
          %239 = sbr.rel (%p237) target = $region36
        $region35: #{tpu_custom_call.1} parent=23 // pred_region
          _
        $region36: #{tpu_custom_call.1} parent=23 // pred_fallthru
          _
        // Predicated region
        $region37: #{tpu_custom_call.1} parent=23 // pred_check
          %p240 = pneg %p104
        $region38: #{tpu_custom_call.1} parent=23 // pred_check_branch
          %242 = sbr.rel (%p240) target = $region40
        $region39: #{tpu_custom_call.1} parent=23 // pred_region
          %244 = vsyncadd %s233, 0
          %s245 = smul.addr %s24, 4
          %s246 = scalar_lea.hbm %s2, %s245
          %s248 = sshll.u32 %s236, 4
          %s249 = int_to_ptr.vmem [resolvable:$true] %s248
          %s250 = sshll.u32 %s246, 4
          %s251 = int_to_ptr.hbm [resolvable:$true] %s250
          %253 = dma.vmem_to_hbm [thread:$0]  %s249, 64, %s251, %s233
        $region40: #{tpu_custom_call.1} parent=23 // pred_fallthru
          _
      $region24: #{tpu_custom_call.1} parent=5 // pred_fallthru
        _
      %p254 = scmp.le.s32.totalorder 2, %s15
      // Predicated region
      $region41: #{tpu_custom_call.1} parent=5 // pred_check
        %p255 = pneg %p254
      $region42: #{tpu_custom_call.1} parent=5 // pred_check_branch
        %257 = sbr.rel (%p255) target = $region44
      $region43: #{tpu_custom_call.1} parent=5 // pred_region
        %s258 = ssub.s32 %s15, 2
        // Predicated region
        $region45: #{tpu_custom_call.1} parent=43 // pred_check
          %p259 = pneg %p84
        $region46: #{tpu_custom_call.1} parent=43 // pred_check_branch
          %261 = sbr.rel (%p259) target = $region48
        $region47: #{tpu_custom_call.1} parent=43 // pred_region
          %p262 = scmp.lt.s32.totalorder %s26, 1
          %s263 = scalar_select %p262, %s26, 1
          %s264 = smul.addr %s263, 4
          %s265 = scalar_lea.vmem %s1, %s264
        $region48: #{tpu_custom_call.1} parent=43 // pred_fallthru
          _
        // Predicated region
        $region49: #{tpu_custom_call.1} parent=43 // pred_check
          %p266 = pneg %p110
        $region50: #{tpu_custom_call.1} parent=43 // pred_check_branch
          %268 = sbr.rel (%p266) target = $region52
        $region51: #{tpu_custom_call.1} parent=43 // pred_region
          %s269 = sand.u32 %s95, 1
          %s270 = scalar_lea.sflag [#allocation4], %s269
          %s271 = sand.u32 %s95, 1
          %s272 = smul.addr %s271, 4
          %s273 = scalar_lea.vmem [#allocation5], %s272
          %275 = dma.done %s270, 64
        $region52: #{tpu_custom_call.1} parent=43 // pred_fallthru
          _
      $region44: #{tpu_custom_call.1} parent=5 // pred_fallthru
        _
    $region6: #{tpu_custom_call.1} parent=1 // loop_footer
      %s19 = sadd.s32 1, %s15
    $region7: #{tpu_custom_call.1} parent=1 // loop_footer_branch
      %14 = sbr.rel target = $region3
    $region8: #{tpu_custom_call.1} parent=1 // loop_exit
      _
    %276 = vsyncpa [#allocation3], 1
    %s277 = scalar_lea.sflag [#allocation3], 1
    %278 = vsyncpa %s277, 1
    %279 = vsyncpa [#allocation4], 1
    %s280 = scalar_lea.sflag [#allocation4], 1
    %281 = vsyncpa %s280, 1

</llo_original>
